<compile_context>
chip_gen: v7x
topology: tpu7x:2x2x1
jax: 0.10.0
libtpu: 0.0.40
codegen_flags: <defaults>
</compile_context>

<pallas_src>
import jax
import jax.numpy as jnp
from jax.experimental import pallas as pl
from jax.experimental.pallas import tpu as pltpu


# ------------------------- kernel bodies ------------------------------------

def _copy_kernel(x_ref, o_ref):
    # Input block is already the central (ho_t, Wo) window -> pure copy.
    o_ref[...] = x_ref[...]


def _slice_w_kernel(x_ref, o_ref):
    # Input block is the central H-third rows with full W; take the middle
    # W-third directly as a ref slice (only the needed lanes go through vregs).
    wo = o_ref.shape[-1]
    o_ref[...] = x_ref[:, :, wo:2 * wo]


# ------------------------- helpers -------------------------------------------

def _sublane_multiple(dtype):
    # vreg is (8 sublane x 128 lane) of 32-bit; narrower dtypes pack sublanes.
    return {4: 8, 2: 16, 1: 32}.get(jnp.dtype(dtype).itemsize, 8)


def _vmem_capacity_bytes():
    try:
        cap = int(pltpu.get_tpu_info().vmem_capacity_bytes)
        if cap > 0:
            return cap
    except Exception:
        pass
    return 64 << 20  # conservative default (v7x per-TensorCore VMEM)


# ------------------------- wrapper --------------------------------------------

def extract_unit_cell_2d(x, *, block_budget_bytes=None, min_grid_steps=8):
    """Pallas implementation of ExtractUnitCell2d.forward.

    Accepts [N, C, H, W], [C, H, W] (leading dims treated as batch) or [H, W].
    H and W must be divisible by 3 (the well-formed 3x3-tiling case the
    PyTorch module is used with; torch.chunk's unequal-chunk behavior for
    non-divisible sizes is not reproduced).
    """
    nd = x.ndim
    if nd > 4:
        raise ValueError(f"Expects ndim <= 4 (got {nd}).")
    if nd < 2:
        raise ValueError(f"Expects ndim >= 2 (got {nd}).")

    a = x
    if nd == 2:
        a = a[None, None, :, :]
    elif nd == 3:
        a = a[None, :, :, :]

    N, C, H, W = a.shape
    if H % 3 != 0 or W % 3 != 0:
        raise ValueError(
            f"spatial dims must be divisible by 3 (got H={H}, W={W}).")
    Ho, Wo = H // 3, W // 3
    NC = N * C
    itemsize = jnp.dtype(a.dtype).itemsize
    sub = _sublane_multiple(a.dtype)

    # Zero-cost row-major view: split H into (3, Ho) so the central H-third is
    # selected with a block index, independent of Ho's sublane alignment.
    tiled = a.reshape(NC, 3, Ho, W)

    vmem_cap = _vmem_capacity_bytes()
    if block_budget_bytes is None:
        # Larger blocks on 128-MiB-VMEM parts (v5e/v6e), smaller on v7x.
        block_budget_bytes = (8 << 20) if vmem_cap >= (96 << 20) else (4 << 20)

    # Lane-aligned unit cell -> push the W offset into the BlockSpec as well
    # and read exactly the central cell (1/9 of the bytes, pure copy).
    copy_path = (Wo % 128 == 0)
    in_w = Wo if copy_path else W
    bytes_per_image_in = Ho * in_w * itemsize

    if bytes_per_image_in <= block_budget_bytes:
        # Pack several images' central thirds per block, but keep >= min_grid_steps
        # grid steps so v7x's two TensorCores both get work and DMAs pipeline.
        ho_t = Ho
        b_mem = max(1, block_budget_bytes // max(1, bytes_per_image_in))
        b_par = max(1, NC // min_grid_steps)
        B = int(max(1, min(b_mem, b_par, NC)))
    else:
        # One image per block; row-tile the central H-third to stay in budget.
        B = 1
        bytes_per_row = in_w * itemsize
        rows = max(1, block_budget_bytes // max(1, bytes_per_row))
        if rows >= Ho:
            ho_t = Ho
        else:
            ho_t = max(sub, (rows // sub) * sub)  # keep (8,128) tiling happy
            if ho_t >= Ho:
                ho_t = Ho
        ho_t = int(ho_t)

    grid = (pl.cdiv(NC, B), pl.cdiv(Ho, ho_t))

    if copy_path:
        kernel = _copy_kernel
        # Block dims: (images, [squeezed 3-dim], rows, cols). Index 1 on the
        # squeezed dim picks the central H-third; block index 1 on the W dim
        # (block size Wo) picks the central W-third.
        in_spec = pl.BlockSpec((B, None, ho_t, Wo), lambda i, j: (i, 1, j, 1))
    else:
        kernel = _slice_w_kernel
        in_spec = pl.BlockSpec((B, None, ho_t, W), lambda i, j: (i, 1, j, 0))
    out_spec = pl.BlockSpec((B, ho_t, Wo), lambda i, j: (i, j, 0))

    # Chip-aware VMEM limit with headroom for compiler-internal scratch.
    in_block_bytes = B * ho_t * in_w * itemsize
    out_block_bytes = B * ho_t * Wo * itemsize
    needed = 2 * (in_block_bytes + out_block_bytes) + (2 << 20)
    max_limit = max(32 << 20, (vmem_cap * 3) // 4)  # ~48 MiB v7x, ~96 MiB v5e/v6e
    vmem_limit = int(min(max(32 << 20, needed), max_limit))

    read_bytes = NC * Ho * in_w * itemsize
    write_bytes = NC * Ho * Wo * itemsize

    out_flat = pl.pallas_call(
        kernel,
        out_shape=jax.ShapeDtypeStruct((NC, Ho, Wo), a.dtype),
        grid_spec=pltpu.PrefetchScalarGridSpec(
            num_scalar_prefetch=0,
            grid=grid,
            in_specs=[in_spec],
            out_specs=out_spec,
        ),
        compiler_params=pltpu.CompilerParams(
            dimension_semantics=("parallel", "parallel"),
            vmem_limit_bytes=vmem_limit,
        ),
        cost_estimate=pl.CostEstimate(
            flops=0,
            transcendentals=0,
            bytes_accessed=int(read_bytes + write_bytes)),
    )(tiled)

    out = out_flat.reshape(N, C, Ho, Wo)
    if nd == 2:
        out = out[0, 0]
    elif nd == 3:
        out = out[0]
    return out


# ------------------------- self-test ------------------------------------------

if __name__ == "__main__":
    key = jax.random.PRNGKey(0)
    k1, k2, k3, k4, k5 = jax.random.split(key, 5)

    def ref(x):
        nd = x.ndim
        a = x if nd == 4 else (x[None, None] if nd == 2 else x[None])
        H, W = a.shape[-2], a.shape[-1]
        ho, wo = H // 3, W // 3
        y = a[..., ho:2 * ho, wo:2 * wo]
        if nd == 2:
            y = y[0, 0]
        elif nd == 3:
            y = y[0]
        return y

    # Case 1: NCHW with a narrow, lane-unaligned unit cell (Wo=16) -> slice-W path.
    x1 = jax.random.normal(k1, (2, 4, 48, 48), dtype=jnp.float32)
    y1 = jax.block_until_ready(extract_unit_cell_2d(x1))
    assert y1.shape == (2, 4, 16, 16), y1.shape
    assert jnp.array_equal(y1, ref(x1)), "case 1 mismatch vs reference"

    # Case 2: lane-aligned unit cell (Wo=128) -> pure-copy 1/9-traffic path.
    x2 = jax.random.normal(k2, (1, 2, 24, 384), dtype=jnp.float32)
    y2 = jax.block_until_ready(extract_unit_cell_2d(x2))
    assert jnp.array_equal(y2, ref(x2)), "case 2 mismatch vs reference"

    # Case 3: 2-D input with a tiny unaligned cell (Ho=3, Wo=4) -> still 1/3 traffic.
    x3 = jax.random.normal(k3, (9, 12), dtype=jnp.float32)
    y3 = jax.block_until_ready(extract_unit_cell_2d(x3))
    assert y3.shape == (3, 4), y3.shape
    assert jnp.array_equal(y3, ref(x3)), "case 3 mismatch vs reference"

    # Case 4: bf16 input (sublane packing differs from f32).
    x4 = jax.random.normal(k4, (2, 3, 24, 96), dtype=jnp.float32).astype(jnp.bfloat16)
    y4 = jax.block_until_ready(extract_unit_cell_2d(x4))
    assert jnp.array_equal(y4, ref(x4)), "case 4 mismatch vs reference"

    # Case 5: N*C not divisible by the image batch -> ragged (masked) last block.
    x5 = jax.random.normal(k5, (17, 1, 24, 24), dtype=jnp.float32)
    y5 = jax.block_until_ready(extract_unit_cell_2d(x5, min_grid_steps=4))
    assert jnp.array_equal(y5, ref(x5)), "case 5 mismatch vs reference"

    print("KERNEL_OK")
</pallas_src>

<mosaic_0001>
module attributes {stable_mosaic.version = 11 : i64} {
  func.func @_slice_w_kernel(%arg0: i32, %arg1: i32, %arg2: memref<1x1x16x48xf32, #tpu.memory_space<vmem>>, %arg3: memref<1x16x16xf32, #tpu.memory_space<vmem>>) attributes {dimension_semantics = [#tpu.dimension_semantics<parallel>, #tpu.dimension_semantics<parallel>], iteration_bounds = array<i64: 8, 1>, scalar_prefetch = 0 : i64, scratch_operands = 0 : i64, tpu.core_type = #tpu.core_type<tc>, window_params = [{transform_indices = @transform_0, window_bounds = array<i64: 1, 1, 16, 48>}, {transform_indices = @transform_1, window_bounds = array<i64: 1, 16, 16>}]} {
    %c0 = arith.constant 0 : index
    %c0_0 = arith.constant 0 : index
    %c0_1 = arith.constant 0 : index
    %c16 = arith.constant 16 : index
    %0 = vector.load %arg2[%c0, %c0_0, %c0_1, %c16] : memref<1x1x16x48xf32, #tpu.memory_space<vmem>>, vector<1x1x16x16xf32>
    %1 = vector.shape_cast %0 : vector<1x1x16x16xf32> to vector<1x16x16xf32>
    %c0_2 = arith.constant 0 : index
    %c0_3 = arith.constant 0 : index
    %c0_4 = arith.constant 0 : index
    %2 = vector.load %arg3[%c0_2, %c0_3, %c0_4] : memref<1x16x16xf32, #tpu.memory_space<vmem>>, vector<1x16x16xf32>
    tpu.vector_store %arg3[%c0_2, %c0_3, %c0_4], %1 {strides = array<i32>} : memref<1x16x16xf32, #tpu.memory_space<vmem>>, vector<1x16x16xf32>,
    return
  }
  func.func @transform_0(%arg0: i32, %arg1: i32) -> (i32, i32, i32, i32) {
    %c1_i32 = arith.constant 1 : i32
    %c0_i32 = arith.constant 0 : i32
    %c0_i32_0 = arith.constant 0 : i32
    return %arg0, %c1_i32, %arg1, %c0_i32 : i32, i32, i32, i32
  }
  func.func @transform_1(%arg0: i32, %arg1: i32) -> (i32, i32, i32) {
    %c0_i32 = arith.constant 0 : i32
    %c0_i32_0 = arith.constant 0 : i32
    return %arg0, %arg1, %c0_i32 : i32, i32, i32
  }
}

</mosaic_0001>

<llo_original>
// kernel: tpu_custom_call.1
$region0: #{tpu_custom_call.1}
  #allocation0 [shape = 'u32[]', space=smem, size = 0x4, offset = 0x4, fixed_abs, tag = 'smem constant byte address 0x4 - core index']
  #allocation1 [shape = 'u32[144,128]{1,0:T(1,128)}', space=vmem, size = 0x12000, scoped, tag = 'internal scratch']
  %s0 = inlined_call_operand.hbm [shape: f32[8,3,16,48], index: 0, kind: input, shape index: {}]
  %s1 = inlined_call_operand.hbm [shape: f32[8,16,16], index: 1, kind: output, shape index: {}]
  %s2 = sld [smem:[#allocation0]]
  $region41: #{tpu_custom_call.1} parent=0
    _
  %s4 = ssub.s32 1, %s2
  %s5 = scalar_select 0, %s4, %s2
  $region1: #{tpu_custom_call.1} parent=0
    #allocation2 [shape = 'u8[16384]{0}', space=vmem, size = 0x4000, scoped, tag = 'input window, operand 0']
    #allocation3 [shape = 's32[2]{0}', space=sflag, size = 0x8, scoped, tag = 'scoped memory for tpu_custom_call.1']
    #allocation4 [shape = 's32[2]{0}', space=sflag, size = 0x8, scoped, tag = 'scoped memory for tpu_custom_call.1']
    #allocation5 [shape = 'u8[16384]{0}', space=vmem, size = 0x4000, scoped, tag = 'output window, operand 0']
    %6 = vsyncpa [#allocation3], 0
    %s7 = scalar_lea.sflag [#allocation3], 1
    %8 = vsyncpa %s7, 0
    %9 = vsyncpa [#allocation4], 0
    %s10 = scalar_lea.sflag [#allocation4], 1
    %11 = vsyncpa %s10, 0
    loop: start=0, step=1, limit=10
    $region2: #{tpu_custom_call.1} parent=1 // loop_pre_header
      _
    $region3: #{tpu_custom_call.1} parent=1 // loop_header
      %s13 = sphi 0, %s17
      %p14 = scmp.ge.s32.totalorder %s13, 10
      %s20 = sphi 0, %s32
      %s21 = sphi 0, %s28
      %s22 = sphi 0, %s20
      %s23 = sphi 0, %s21
      %s24 = sphi 0, %s22
      %s25 = sphi 0, %s23
      %s37 = sphi 0, %s39
      %s40 = sphi 0, %s37
      %s41 = sphi 0, %s40
      %s57 = sphi 0, %s41
      %s65 = sphi 0, %s67
      %s68 = sphi 0, %s65
      %s69 = sphi 0, %s68
      %s85 = sphi 0, %s69
    $region4: #{tpu_custom_call.1} parent=1 // loop_header_branch
      %16 = sbr.rel (%p14) target = $region8
    $region5: #{tpu_custom_call.1} parent=1 // loop_body
      %s18 = ssub.s32 %s13, 1
      %s19 = ssub.s32 %s13, 2
      %s26 = sadd.s32 1, %s21
      %p27 = scmp.ge.s32.totalorder %s26, 1
      %s28 = scalar_select %p27, 0, %s26
      %s29 = sadd.s32 1, %s20
      %s30 = scalar_select %p27, %s29, %s20
      %p31 = scmp.ge.s32.totalorder %s30, 8
      %s32 = scalar_select %p31, 0, %s30
      %s33 = ssub.s32 %s20, %s32
      %s34 = ssub.s32 %s21, %s28
      %s35 = sor.u32 %s33, %s34
      %p36 = scmp.eq.s32.totalorder %s35, 0
      %s38 = sadd.s32 %s37, 1
      %s39 = scalar_select %p36, %s37, %s38
      %p42 = pneg %p36
      %p43 = scmp.eq.s32.totalorder %s13, 7
      %p44 = por %p42, %p43
      %p45 = scmp.ne.s32.totalorder %s37, %s40
      %p46 = scmp.eq.s32.totalorder %s13, 0
      %p47 = por %p45, %p46
      %p48 = scmp.ne.s32.totalorder %s37, %s40
      %p49 = scmp.eq.s32.totalorder %s18, 7
      %p50 = por %p48, %p49
      %p51 = scmp.ne.s32.totalorder %s40, %s41
      %p52 = scmp.eq.s32.totalorder %s18, 0
      %p53 = por %p51, %p52
      %p54 = scmp.ne.s32.totalorder %s40, %s41
      %p55 = scmp.eq.s32.totalorder %s19, 7
      %p56 = por %p54, %p55
      %p58 = scmp.ne.s32.totalorder %s41, %s57
      %p59 = scmp.eq.s32.totalorder %s19, 0
      %p60 = por %p58, %p59
      %s61 = ssub.s32 %s20, %s32
      %s62 = ssub.s32 %s21, %s28
      %s63 = sor.u32 %s61, %s62
      %p64 = scmp.eq.s32.totalorder %s63, 0
      %s66 = sadd.s32 %s65, 1
      %s67 = scalar_select %p64, %s65, %s66
      %p70 = pneg %p64
      %p71 = scmp.eq.s32.totalorder %s13, 7
      %p72 = por %p70, %p71
      %p73 = scmp.ne.s32.totalorder %s65, %s68
      %p74 = scmp.eq.s32.totalorder %s13, 0
      %p75 = por %p73, %p74
      %p76 = scmp.ne.s32.totalorder %s65, %s68
      %p77 = scmp.eq.s32.totalorder %s18, 7
      %p78 = por %p76, %p77
      %p79 = scmp.ne.s32.totalorder %s68, %s69
      %p80 = scmp.eq.s32.totalorder %s18, 0
      %p81 = por %p79, %p80
      %p82 = scmp.ne.s32.totalorder %s68, %s69
      %p83 = scmp.eq.s32.totalorder %s19, 7
      %p84 = por %p82, %p83
      %p86 = scmp.ne.s32.totalorder %s69, %s85
      %p87 = scmp.eq.s32.totalorder %s19, 0
      %p88 = por %p86, %p87
      %p89 = scmp.le.s32.totalorder 1, %s13
      %p90 = scmp.lt.s32.totalorder %s13, 9
      %p91 = pnand %p89, %p90
      %p92 = pneg %p91
      // Predicated region
      $region9: #{tpu_custom_call.1} parent=5 // pred_check
        _
      $region10: #{tpu_custom_call.1} parent=5 // pred_check_branch
        %94 = sbr.rel (%p91) target = $region12
      $region11: #{tpu_custom_call.1} parent=5 // pred_region
        %s95 = ssub.s32 %s13, 1
      $region12: #{tpu_custom_call.1} parent=5 // pred_fallthru
        _
      %p96 = scmp.lt.s32.totalorder %s13, 8
      // Predicated region
      $region13: #{tpu_custom_call.1} parent=5 // pred_check
        %p97 = pneg %p96
      $region14: #{tpu_custom_call.1} parent=5 // pred_check_branch
        %99 = sbr.rel (%p97) target = $region16
      $region15: #{tpu_custom_call.1} parent=5 // pred_region
        // Predicated region
        $region17: #{tpu_custom_call.1} parent=15 // pred_check
          %p100 = pneg %p47
        $region18: #{tpu_custom_call.1} parent=15 // pred_check_branch
          %102 = sbr.rel (%p100) target = $region20
        $region19: #{tpu_custom_call.1} parent=15 // pred_region
          %s103 = sand.u32 %s37, 1
          %s104 = scalar_lea.sflag [#allocation3], %s103
          %s105 = sand.u32 %s37, 1
          %s106 = smul.addr %s105, 16
          %s107 = scalar_lea.vmem [#allocation2], %s106
          %s108 = smul.u32 2, %s21
          %s110 = ssub.s32 256, 256
          %111 = vsyncadd %s104, %s110
          %s112 = sadd.s32 %s108, 2
          %s113 = smul.addr %s20, 6
          %s114 = sadd.s32 %s112, %s113
          %s115 = smul.addr %s114, 128
          %s116 = scalar_lea.hbm %s0, %s115
          %s117 = sshll.u32 %s107, 4
          %s118 = int_to_ptr.vmem [resolvable:$true] %s117
          %123 = dma.hbm_to_vmem [thread:$0]  %s116, 256, %s118, %s104, 128, 128, 8
        $region20: #{tpu_custom_call.1} parent=15 // pred_fallthru
          _
      $region16: #{tpu_custom_call.1} parent=5 // pred_fallthru
        _
      %p124 = scmp.le.s32.totalorder 1, %s13
      %p125 = scmp.lt.s32.totalorder %s13, 9
      %p126 = pnand %p124, %p125
      %p127 = pneg %p126
      // Predicated region
      $region21: #{tpu_custom_call.1} parent=5 // pred_check
        _
      $region22: #{tpu_custom_call.1} parent=5 // pred_check_branch
        %129 = sbr.rel (%p126) target = $region24
      $region23: #{tpu_custom_call.1} parent=5 // pred_region
        %s130 = ssub.s32 %s13, 1
        %s131 = sand.u32 %s40, 1
        %s132 = scalar_lea.sflag [#allocation3], %s131
        %s133 = sand.u32 %s40, 1
        %s134 = smul.addr %s133, 16
        %s135 = scalar_lea.vmem [#allocation2], %s134
        // Predicated region
        $region25: #{tpu_custom_call.1} parent=23 // pred_check
          %p136 = pneg %p53
        $region26: #{tpu_custom_call.1} parent=23 // pred_check_branch
          %138 = sbr.rel (%p136) target = $region28
        $region27: #{tpu_custom_call.1} parent=23 // pred_region
          %139 = dma.done %s132, 256
        $region28: #{tpu_custom_call.1} parent=23 // pred_fallthru
          _
        %s140 = sand.u32 %s40, 1
        %s141 = scalar_lea.sflag [#allocation3], %s140
        %s142 = sand.u32 %s40, 1
        %s143 = smul.addr %s142, 16
        %s144 = scalar_lea.vmem [#allocation2], %s143
        %p145 = pneg %p53
        %p146 = pneg %p50
        %p147 = pneg %p81
        %p148 = pneg %p78
        %s149 = sand.u32 %s68, 1
        %s150 = scalar_lea.sflag [#allocation4], %s149
        %s151 = sand.u32 %s68, 1
        %s152 = smul.addr %s151, 16
        %s153 = scalar_lea.vmem [#allocation5], %s152
        %s154 = smul.u32 2, %s23
        %s155 = smul.u32 2, %s23
        %v156 = vld [vmem:[%s135] sm:$0xff]
        %v157 = vld [vmem:[%s135 + $0x8] sm:$0xff]
        %160 = vrot.lane.b32.xlu0 %v156, 112
        %v161 = vpop.permute.xlu0 %160
        %162 = vrot.lane.b32.xlu0 %v157, 112
        %v163 = vpop.permute.xlu0 %162
        %vm166 = vcmask 130048
        %167 = vst.msk [vmem:[%s153] sm:$0xff] %vm166, %v161
        %168 = vst.msk [vmem:[%s153 + $0x8] sm:$0xff] %vm166, %v163
        %s169 = sand.u32 %s68, 1
        %s170 = scalar_lea.sflag [#allocation4], %s169
        %s171 = sand.u32 %s68, 1
        %s172 = smul.addr %s171, 16
        %s173 = scalar_lea.vmem [#allocation5], %s172
        // Predicated region
        $region29: #{tpu_custom_call.1} parent=23 // pred_check
          %p174 = pneg %p78
        $region30: #{tpu_custom_call.1} parent=23 // pred_check_branch
          %176 = sbr.rel (%p174) target = $region32
        $region31: #{tpu_custom_call.1} parent=23 // pred_region
          %s177 = smul.u32 2, %s23
          %s179 = ssub.s32 256, 256
          %180 = vsyncadd %s170, %s179
          %s181 = smul.addr %s22, 2
          %s182 = sadd.s32 %s177, %s181
          %s183 = smul.addr %s182, 128
          %s184 = scalar_lea.hbm %s1, %s183
          %s185 = sshll.u32 %s173, 4
          %s186 = int_to_ptr.vmem [resolvable:$true] %s185
          %191 = dma.vmem_to_hbm [thread:$0]  %s186, 256, %s184, %s170, 128, 128, 8
        $region32: #{tpu_custom_call.1} parent=23 // pred_fallthru
          _
      $region24: #{tpu_custom_call.1} parent=5 // pred_fallthru
        _
      %p192 = scmp.le.s32.totalorder 2, %s13
      // Predicated region
      $region33: #{tpu_custom_call.1} parent=5 // pred_check
        %p193 = pneg %p192
      $region34: #{tpu_custom_call.1} parent=5 // pred_check_branch
        %195 = sbr.rel (%p193) target = $region36
      $region35: #{tpu_custom_call.1} parent=5 // pred_region
        %s196 = ssub.s32 %s13, 2
        // Predicated region
        $region37: #{tpu_custom_call.1} parent=35 // pred_check
          %p197 = pneg %p84
        $region38: #{tpu_custom_call.1} parent=35 // pred_check_branch
          %199 = sbr.rel (%p197) target = $region40
        $region39: #{tpu_custom_call.1} parent=35 // pred_region
          %s200 = sand.u32 %s69, 1
          %s201 = scalar_lea.sflag [#allocation4], %s200
          %s202 = sand.u32 %s69, 1
          %s203 = smul.addr %s202, 16
          %s204 = scalar_lea.vmem [#allocation5], %s203
          %205 = dma.done %s201, 256
        $region40: #{tpu_custom_call.1} parent=35 // pred_fallthru
          _
      $region36: #{tpu_custom_call.1} parent=5 // pred_fallthru
        _
    $region6: #{tpu_custom_call.1} parent=1 // loop_footer
      %s17 = sadd.s32 1, %s13
    $region7: #{tpu_custom_call.1} parent=1 // loop_footer_branch
      %12 = sbr.rel target = $region3
    $region8: #{tpu_custom_call.1} parent=1 // loop_exit
      _
    %206 = vsyncpa [#allocation3], 1
    %s207 = scalar_lea.sflag [#allocation3], 1
    %208 = vsyncpa %s207, 1
    %209 = vsyncpa [#allocation4], 1
    %s210 = scalar_lea.sflag [#allocation4], 1
    %211 = vsyncpa %s210, 1

</llo_original>
